<compile_context>
chip_gen: v7x
topology: tpu7x:2x2x1
jax: 0.10.0
libtpu: 0.0.40
codegen_flags: <defaults>
</compile_context>

<pallas_src>
import functools

import jax
import jax.numpy as jnp
import numpy as np
from jax.experimental import pallas as pl
from jax.experimental.pallas import tpu as pltpu


# TODO(synk): `norm_adj` is not defined in the provided source; row-normalization
# (A / rowsum) is assumed here.
def norm_adj(a):
    rowsum = jnp.sum(a, axis=-1, keepdims=True)
    return a / jnp.where(rowsum == 0.0, 1.0, rowsum)


def _stgcn_kernel(x_ref, bigadj_ref, w12t_ref, b12f_ref, gamma_ref, beta_ref,
                  out_ref, *, seq_len, num_nodes, hidden_dim, eps):
    T, N, D = seq_len, num_nodes, hidden_dim

    x_all = x_ref[0]                                    # (T, N, D)
    x_flat = x_all.reshape(T * N, D)

    # (1) Temporal-graph aggregation of the raw features: one banded matmul
    #     replaces T tiny per-timestep (N, W*N) dots.  bf16 operands, f32 acc.
    agg = jnp.dot(bigadj_ref[...], x_flat.astype(jnp.bfloat16),
                  preferred_element_type=jnp.float32)   # (T*N, D) f32

    # (2) Fused projection of the aggregated features (adjacency and Linear are
    #     both linear, so the order swap is exact).  The bias term — including
    #     the zero-pad frames' contribution — is pre-folded into b12_full.
    g12 = jnp.dot(agg.astype(jnp.bfloat16), w12t_ref[...],
                  preferred_element_type=jnp.float32)   # (T*N, 2D) f32
    g12 = g12.reshape(T, N, 2 * D) + b12f_ref[...]      # + (N, 2D) broadcast

    g1 = g12[..., :D]                                   # adj @ proj_1(win)
    g2 = g12[..., D:]                                   # adj @ proj_2(win)

    # (3) Gated interaction + residual + LayerNorm over D, vectorized over the
    #     whole (T, N, D) block.
    full = jnp.maximum(g1 * g2, 0.0) + g1               # ReLU(g1*g2) + g1
    res = full + x_all.astype(jnp.float32)
    mean = jnp.mean(res, axis=-1, keepdims=True)
    var = jnp.mean(jnp.square(res - mean), axis=-1, keepdims=True)
    normed = (res - mean) * jax.lax.rsqrt(var + eps)

    # Single dense block store (one output DMA per grid step).
    out_ref[0] = (normed * gamma_ref[0] + beta_ref[0]).astype(out_ref.dtype)


def stgcn_forward(x, params, window_size=2):
    B, T, N, D = x.shape
    W = window_size

    adj = params["expanded_adj"]                        # (N, W*N)

    # Block-banded temporal-graph operator:
    #   big[t*N:(t+1)*N, s*N:(s+1)*N] = A_w  with  w = s - t + (W-1), 0<=w<W,
    # where A_w = expanded_adj[:, w*N:(w+1)*N]; out-of-range (padded) frames
    # simply have no column block (their projected value's bias part is folded
    # into b12_full below, and their x part is zero).
    big = jnp.zeros((T * N, T * N), jnp.float32)
    for t in range(T):
        for w in range(W):
            s = t + w - (W - 1)
            if s < 0:
                continue
            big = big.at[t * N:(t + 1) * N, s * N:(s + 1) * N].set(
                adj[:, w * N:(w + 1) * N])
    big = big.astype(jnp.bfloat16)

    # Fuse the two Linear layers: one (D, 2D) weight (bf16 for single-pass MXU)
    # and the window-aggregated bias  rowsum(adj) ⊗ [b1 | b2]  (exact: the
    # padded frames also project to the bias, so every window contributes the
    # full row-sum of expanded_adj times the bias).
    w12t = jnp.concatenate([params["w1"].T, params["w2"].T],
                           axis=1).astype(jnp.bfloat16)            # (D, 2D)
    b12 = jnp.concatenate([params["b1"], params["b2"]]).reshape(1, 2 * D)
    b12_full = adj.sum(axis=1, keepdims=True) * b12                # (N, 2D)
    gamma = params["gamma"].reshape(1, D)
    beta = params["beta"].reshape(1, D)

    kernel = functools.partial(
        _stgcn_kernel, seq_len=T, num_nodes=N, hidden_dim=D, eps=1e-5)

    return pl.pallas_call(
        kernel,
        out_shape=jax.ShapeDtypeStruct((B, T, N, D), x.dtype),
        grid_spec=pltpu.PrefetchScalarGridSpec(
            num_scalar_prefetch=0,
            grid=(B,),
            in_specs=[
                pl.BlockSpec((1, T, N, D), lambda b: (b, 0, 0, 0)),   # x
                pl.BlockSpec((T * N, T * N), lambda b: (0, 0)),       # banded adj
                pl.BlockSpec((D, 2 * D), lambda b: (0, 0)),           # fused W^T
                pl.BlockSpec((N, 2 * D), lambda b: (0, 0)),           # fused bias
                pl.BlockSpec((1, D), lambda b: (0, 0)),               # gamma
                pl.BlockSpec((1, D), lambda b: (0, 0)),               # beta
            ],
            out_specs=pl.BlockSpec((1, T, N, D), lambda b: (b, 0, 0, 0)),
        ),
        compiler_params=pltpu.CompilerParams(
            dimension_semantics=("parallel",),
            vmem_limit_bytes=32 * 1024 * 1024),
    )(x, big, w12t, b12_full, gamma, beta)


def ref_forward(x, params, window_size=2):
    """Pure-JAX reference mirroring the PyTorch forward (fp32-accurate)."""
    B, T, N, D = x.shape
    pad = jnp.zeros((B, window_size - 1, N, D), dtype=x.dtype)
    feat = jnp.concatenate([pad, x], axis=1)
    adj = params["expanded_adj"]
    outs = []
    for i in range(T):
        win = feat[:, i:i + window_size]                # (B, W, N, D)
        lg = win.reshape(B, -1, D)
        p1 = jnp.einsum("bmd,ed->bme", lg, params["w1"],
                        precision=jax.lax.Precision.HIGHEST) + params["b1"]
        p2 = jnp.einsum("bmd,ed->bme", lg, params["w2"],
                        precision=jax.lax.Precision.HIGHEST) + params["b2"]
        g1 = jnp.einsum("nm,bmd->bnd", adj, p1, precision=jax.lax.Precision.HIGHEST)
        g2 = jnp.einsum("nm,bmd->bnd", adj, p2, precision=jax.lax.Precision.HIGHEST)
        outs.append(jax.nn.relu(g1 * g2) + g1)
    nxt = jnp.stack(outs, axis=1)
    res = nxt + x
    mean = res.mean(-1, keepdims=True)
    var = ((res - mean) ** 2).mean(-1, keepdims=True)
    return (res - mean) / jnp.sqrt(var + 1e-5) * params["gamma"] + params["beta"]


def make_params(num_nodes, hidden_dim, window_size, key):
    N, D, W = num_nodes, hidden_dim, window_size
    k1, k2, k3, k4, k5 = jax.random.split(key, 5)
    w1 = jax.random.normal(k1, (D, D), jnp.float32) * 0.1          # (out, in)
    b1 = jax.random.normal(k2, (D,), jnp.float32) * 0.1
    w2 = jax.random.normal(k3, (D, D), jnp.float32) * 0.1
    b2 = jax.random.normal(k4, (D,), jnp.float32) * 0.1
    gamma = jnp.ones((D,), jnp.float32)
    beta = jnp.zeros((D,), jnp.float32)

    # Faithful reproduction of the __init__ adjacency construction:
    predefined_adj = jax.random.uniform(k5, (N, N), jnp.float32)
    exp = jnp.zeros((N, N * W), jnp.float32)
    exp = exp.at[:N, -N:].set(predefined_adj)
    # NOTE: this line in the original module overwrites the whole matrix with
    # repeated identity blocks (as written in the PyTorch source).
    exp = exp.at[:N, :].set(jnp.tile(jnp.eye(N, dtype=jnp.float32), (1, W)))
    exp = norm_adj(exp)

    return dict(w1=w1, b1=b1, w2=w2, b2=b2, gamma=gamma, beta=beta,
                expanded_adj=exp)


if __name__ == "__main__":
    B, T, N, D, W = 2, 8, 16, 32, 2
    key = jax.random.PRNGKey(0)
    kx, kp = jax.random.split(key)
    x = jax.random.normal(kx, (B, T, N, D), jnp.float32)
    params = make_params(N, D, W, kp)

    out = stgcn_forward(x, params, window_size=W)
    out = jax.block_until_ready(out)

    ref = jax.block_until_ready(ref_forward(x, params, window_size=W))
    # Kernel uses explicit bf16 MXU operands with f32 accumulation (per the
    # perf review); the reference is fp32-accurate, so allow ~3% slack.
    np.testing.assert_allclose(np.asarray(out), np.asarray(ref),
                               atol=3e-2, rtol=3e-2)
    print("KERNEL_OK")
</pallas_src>

<mosaic_0001>
module attributes {stable_mosaic.version = 11 : i64} {
  func.func @_stgcn_kernel(%arg0: i32, %arg1: memref<1x8x16x32xf32, #tpu.memory_space<vmem>>, %arg2: memref<128x128xbf16, #tpu.memory_space<vmem>>, %arg3: memref<32x64xbf16, #tpu.memory_space<vmem>>, %arg4: memref<16x64xf32, #tpu.memory_space<vmem>>, %arg5: memref<1x32xf32, #tpu.memory_space<vmem>>, %arg6: memref<1x32xf32, #tpu.memory_space<vmem>>, %arg7: memref<1x8x16x32xf32, #tpu.memory_space<vmem>>) attributes {dimension_semantics = [#tpu.dimension_semantics<parallel>], iteration_bounds = array<i64: 2>, scalar_prefetch = 0 : i64, scratch_operands = 0 : i64, tpu.core_type = #tpu.core_type<tc>, window_params = [{transform_indices = @transform_0, window_bounds = array<i64: 1, 8, 16, 32>}, {pipeline_mode = #tpu.pipeline_mode<synchronous>, transform_indices = @transform_1, window_bounds = array<i64: 128, 128>}, {pipeline_mode = #tpu.pipeline_mode<synchronous>, transform_indices = @transform_2, window_bounds = array<i64: 32, 64>}, {pipeline_mode = #tpu.pipeline_mode<synchronous>, transform_indices = @transform_3, window_bounds = array<i64: 16, 64>}, {pipeline_mode = #tpu.pipeline_mode<synchronous>, transform_indices = @transform_4, window_bounds = array<i64: 1, 32>}, {pipeline_mode = #tpu.pipeline_mode<synchronous>, transform_indices = @transform_5, window_bounds = array<i64: 1, 32>}, {transform_indices = @transform_6, window_bounds = array<i64: 1, 8, 16, 32>}]} {
    %c0 = arith.constant 0 : index
    %c0_0 = arith.constant 0 : index
    %c0_1 = arith.constant 0 : index
    %c0_2 = arith.constant 0 : index
    %0 = vector.load %arg1[%c0, %c0_0, %c0_1, %c0_2] : memref<1x8x16x32xf32, #tpu.memory_space<vmem>>, vector<1x8x16x32xf32>
    %1 = vector.shape_cast %0 : vector<1x8x16x32xf32> to vector<8x16x32xf32>
    %2 = vector.shape_cast %1 : vector<8x16x32xf32> to vector<128x32xf32>
    %c0_3 = arith.constant 0 : index
    %c0_4 = arith.constant 0 : index
    %3 = vector.load %arg2[%c0_3, %c0_4] : memref<128x128xbf16, #tpu.memory_space<vmem>>, vector<128x128xbf16>
    %4 = arith.truncf %2 : vector<128x32xf32> to vector<128x32xbf16>
    %cst = arith.constant dense<0.000000e+00> : vector<128x32xf32>
    %5 = tpu.matmul %3, %4, %cst {dimension_numbers = #tpu.dot_dimension_numbers<[1], [0], [0], [1], [0, 0, 1, 1], [], []>} : vector<128x128xbf16>, vector<128x32xbf16>, vector<128x32xf32> -> vector<128x32xf32>
    %6 = arith.truncf %5 : vector<128x32xf32> to vector<128x32xbf16>
    %c0_5 = arith.constant 0 : index
    %c0_6 = arith.constant 0 : index
    %7 = vector.load %arg3[%c0_5, %c0_6] : memref<32x64xbf16, #tpu.memory_space<vmem>>, vector<32x64xbf16>
    %cst_7 = arith.constant dense<0.000000e+00> : vector<128x64xf32>
    %8 = tpu.matmul %6, %7, %cst_7 {dimension_numbers = #tpu.dot_dimension_numbers<[1], [0], [0], [1], [0, 0, 1, 1], [], []>} : vector<128x32xbf16>, vector<32x64xbf16>, vector<128x64xf32> -> vector<128x64xf32>
    %9 = vector.shape_cast %8 : vector<128x64xf32> to vector<8x16x64xf32>
    %c0_8 = arith.constant 0 : index
    %c0_9 = arith.constant 0 : index
    %10 = vector.load %arg4[%c0_8, %c0_9] : memref<16x64xf32, #tpu.memory_space<vmem>>, vector<16x64xf32>
    %11 = vector.shape_cast %10 : vector<16x64xf32> to vector<1x16x64xf32>
    %12 = vector.broadcast %11 : vector<1x16x64xf32> to vector<8x16x64xf32>
    %13 = arith.addf %9, %12 : vector<8x16x64xf32>
    %14 = vector.extract_strided_slice %13 {offsets = [0, 0, 0], sizes = [8, 16, 32], strides = [1, 1, 1]} : vector<8x16x64xf32> to vector<8x16x32xf32>
    %15 = vector.extract_strided_slice %13 {offsets = [0, 0, 32], sizes = [8, 16, 32], strides = [1, 1, 1]} : vector<8x16x64xf32> to vector<8x16x32xf32>
    %16 = arith.mulf %14, %15 : vector<8x16x32xf32>
    %cst_10 = arith.constant 0.000000e+00 : f32
    %17 = vector.broadcast %cst_10 : f32 to vector<8x16x32xf32>
    %18 = arith.maximumf %16, %17 : vector<8x16x32xf32>
    %19 = arith.addf %18, %14 : vector<8x16x32xf32>
    %20 = arith.addf %19, %1 : vector<8x16x32xf32>
    %cst_11 = arith.constant dense<0.000000e+00> : vector<8x16xf32>
    %21 = vector.multi_reduction <add>, %20, %cst_11 [2] : vector<8x16x32xf32> to vector<8x16xf32>
    %22 = vector.shape_cast %21 : vector<8x16xf32> to vector<8x16x1xf32>
    %cst_12 = arith.constant 3.200000e+01 : f32
    %23 = vector.broadcast %cst_12 : f32 to vector<8x16x1xf32>
    %24 = arith.divf %22, %23 : vector<8x16x1xf32>
    %25 = vector.broadcast %24 : vector<8x16x1xf32> to vector<8x16x32xf32>
    %26 = arith.subf %20, %25 : vector<8x16x32xf32>
    %27 = arith.mulf %26, %26 : vector<8x16x32xf32>
    %cst_13 = arith.constant dense<0.000000e+00> : vector<8x16xf32>
    %28 = vector.multi_reduction <add>, %27, %cst_13 [2] : vector<8x16x32xf32> to vector<8x16xf32>
    %29 = vector.shape_cast %28 : vector<8x16xf32> to vector<8x16x1xf32>
    %cst_14 = arith.constant 3.200000e+01 : f32
    %30 = vector.broadcast %cst_14 : f32 to vector<8x16x1xf32>
    %31 = arith.divf %29, %30 : vector<8x16x1xf32>
    %32 = vector.broadcast %24 : vector<8x16x1xf32> to vector<8x16x32xf32>
    %33 = arith.subf %20, %32 : vector<8x16x32xf32>
    %cst_15 = arith.constant 9.99999974E-6 : f32
    %34 = vector.broadcast %cst_15 : f32 to vector<8x16x1xf32>
    %35 = arith.addf %31, %34 : vector<8x16x1xf32>
    %36 = math.rsqrt %35 : vector<8x16x1xf32>
    %37 = vector.broadcast %36 : vector<8x16x1xf32> to vector<8x16x32xf32>
    %38 = arith.mulf %33, %37 : vector<8x16x32xf32>
    %c0_16 = arith.constant 0 : index
    %c0_17 = arith.constant 0 : index
    %39 = vector.load %arg5[%c0_16, %c0_17] : memref<1x32xf32, #tpu.memory_space<vmem>>, vector<1x32xf32>
    %40 = vector.shape_cast %39 : vector<1x32xf32> to vector<32xf32>
    %41 = vector.shape_cast %40 : vector<32xf32> to vector<1x1x32xf32>
    %42 = vector.broadcast %41 : vector<1x1x32xf32> to vector<8x16x32xf32>
    %43 = arith.mulf %38, %42 : vector<8x16x32xf32>
    %c0_18 = arith.constant 0 : index
    %c0_19 = arith.constant 0 : index
    %44 = vector.load %arg6[%c0_18, %c0_19] : memref<1x32xf32, #tpu.memory_space<vmem>>, vector<1x32xf32>
    %45 = vector.shape_cast %44 : vector<1x32xf32> to vector<32xf32>
    %46 = vector.shape_cast %45 : vector<32xf32> to vector<1x1x32xf32>
    %47 = vector.broadcast %46 : vector<1x1x32xf32> to vector<8x16x32xf32>
    %48 = arith.addf %43, %47 : vector<8x16x32xf32>
    %c0_20 = arith.constant 0 : index
    %c0_21 = arith.constant 0 : index
    %c0_22 = arith.constant 0 : index
    %c0_23 = arith.constant 0 : index
    %49 = vector.load %arg7[%c0_20, %c0_21, %c0_22, %c0_23] : memref<1x8x16x32xf32, #tpu.memory_space<vmem>>, vector<1x8x16x32xf32>
    %50 = vector.shape_cast %49 : vector<1x8x16x32xf32> to vector<8x16x32xf32>
    %51 = vector.shape_cast %48 : vector<8x16x32xf32> to vector<1x8x16x32xf32>
    tpu.vector_store %arg7[%c0_20, %c0_21, %c0_22, %c0_23], %51 {strides = array<i32>} : memref<1x8x16x32xf32, #tpu.memory_space<vmem>>, vector<1x8x16x32xf32>,
    return
  }
  func.func @transform_0(%arg0: i32) -> (i32, i32, i32, i32) {
    %c0_i32 = arith.constant 0 : i32
    %c0_i32_0 = arith.constant 0 : i32
    %c0_i32_1 = arith.constant 0 : i32
    %c0_i32_2 = arith.constant 0 : i32
    return %arg0, %c0_i32, %c0_i32_0, %c0_i32_1 : i32, i32, i32, i32
  }
  func.func @transform_1(%arg0: i32) -> (i32, i32) {
    %c0_i32 = arith.constant 0 : i32
    %c0_i32_0 = arith.constant 0 : i32
    %c0_i32_1 = arith.constant 0 : i32
    return %c0_i32, %c0_i32_0 : i32, i32
  }
  func.func @transform_2(%arg0: i32) -> (i32, i32) {
    %c0_i32 = arith.constant 0 : i32
    %c0_i32_0 = arith.constant 0 : i32
    %c0_i32_1 = arith.constant 0 : i32
    return %c0_i32, %c0_i32_0 : i32, i32
  }
  func.func @transform_3(%arg0: i32) -> (i32, i32) {
    %c0_i32 = arith.constant 0 : i32
    %c0_i32_0 = arith.constant 0 : i32
    %c0_i32_1 = arith.constant 0 : i32
    return %c0_i32, %c0_i32_0 : i32, i32
  }
  func.func @transform_4(%arg0: i32) -> (i32, i32) {
    %c0_i32 = arith.constant 0 : i32
    %c0_i32_0 = arith.constant 0 : i32
    %c0_i32_1 = arith.constant 0 : i32
    return %c0_i32, %c0_i32_0 : i32, i32
  }
  func.func @transform_5(%arg0: i32) -> (i32, i32) {
    %c0_i32 = arith.constant 0 : i32
    %c0_i32_0 = arith.constant 0 : i32
    %c0_i32_1 = arith.constant 0 : i32
    return %c0_i32, %c0_i32_0 : i32, i32
  }
  func.func @transform_6(%arg0: i32) -> (i32, i32, i32, i32) {
    %c0_i32 = arith.constant 0 : i32
    %c0_i32_0 = arith.constant 0 : i32
    %c0_i32_1 = arith.constant 0 : i32
    %c0_i32_2 = arith.constant 0 : i32
    return %arg0, %c0_i32, %c0_i32_0, %c0_i32_1 : i32, i32, i32, i32
  }
}

</mosaic_0001>

<llo_original>
// kernel: tpu_custom_call.1
$region0: #{tpu_custom_call.1}
  #allocation0 [shape = 'u32[]', space=smem, size = 0x4, offset = 0x4, fixed_abs, tag = 'smem constant byte address 0x4 - core index']
  #allocation1 [shape = 'u32[144,128]{1,0:T(1,128)}', space=vmem, size = 0x12000, scoped, tag = 'internal scratch']
  %s0 = inlined_call_operand.hbm [shape: f32[2,8,16,32], index: 0, kind: input, shape index: {}]
  %s1 = inlined_call_operand.hbm [shape: bf16[128,128], index: 1, kind: input, shape index: {}]
  %s2 = inlined_call_operand.hbm [shape: bf16[32,64], index: 2, kind: input, shape index: {}]
  %s3 = inlined_call_operand.hbm [shape: f32[16,64], index: 3, kind: input, shape index: {}]
  %s4 = inlined_call_operand.vmem [shape: f32[1,32], index: 4, kind: input, shape index: {}]
  %s5 = inlined_call_operand.vmem [shape: f32[1,32], index: 5, kind: input, shape index: {}]
  %s6 = inlined_call_operand.hbm [shape: f32[2,8,16,32], index: 6, kind: output, shape index: {}]
  %s7 = sld [smem:[#allocation0]]
  $region73: #{tpu_custom_call.1} parent=0
    _
  %s9 = ssub.s32 1, %s7
  %s10 = scalar_select 0, %s9, %s7
  $region1: #{tpu_custom_call.1} parent=0
    #allocation2 [shape = 'u8[131072]{0}', space=vmem, size = 0x20000, scoped, tag = 'input window, operand 0']
    #allocation3 [shape = 's32[2]{0}', space=sflag, size = 0x8, scoped, tag = 'scoped memory for tpu_custom_call.1']
    #allocation4 [shape = 's32[2]{0}', space=sflag, size = 0x8, scoped, tag = 'scoped memory for tpu_custom_call.1']
    #allocation5 [shape = 'u8[32768]{0}', space=vmem, size = 0x8000, scoped, tag = 'input window, operand 1, single buffered']
    #allocation6 [shape = 's32[1]{0}', space=sflag, size = 0x4, scoped, tag = 'scoped memory for tpu_custom_call.1']
    #allocation7 [shape = 'u8[8192]{0}', space=vmem, size = 0x2000, scoped, tag = 'input window, operand 2, single buffered']
    #allocation8 [shape = 'u8[8192]{0}', space=vmem, size = 0x2000, scoped, tag = 'input window, operand 3, single buffered']
    #allocation9 [shape = 's32[1]{0}', space=sflag, size = 0x4, scoped, tag = 'scoped memory for tpu_custom_call.1']
    #allocation10 [shape = 'u8[131072]{0}', space=vmem, size = 0x20000, scoped, tag = 'output window, operand 0']
    %11 = vsyncpa [#allocation3], 0
    %s12 = scalar_lea.sflag [#allocation3], 1
    %13 = vsyncpa %s12, 0
    %14 = vsyncpa [#allocation6], 0
    %15 = vsyncpa [#allocation9], 0
    %16 = vsyncpa [#allocation4], 0
    %s17 = scalar_lea.sflag [#allocation4], 1
    %18 = vsyncpa %s17, 0
    loop: start=0, step=1, limit=4
    $region2: #{tpu_custom_call.1} parent=1 // loop_pre_header
      _
    $region3: #{tpu_custom_call.1} parent=1 // loop_header
      %s20 = sphi 0, %s24
      %p21 = scmp.ge.s32.totalorder %s20, 4
      %s30 = sphi 0, %s32
      %s33 = sphi 0, %s30
      %s34 = sphi 0, %s33
      %s50 = sphi 0, %s34
      %s54 = sphi 0, %s54
      %s56 = sphi 0, %s54
      %s57 = sphi 0, %s56
      %s71 = sphi 0, %s57
      %s75 = sphi 0, %s75
      %s77 = sphi 0, %s75
      %s78 = sphi 0, %s77
      %s92 = sphi 0, %s78
      %s96 = sphi 0, %s96
      %s98 = sphi 0, %s96
      %s99 = sphi 0, %s98
      %s113 = sphi 0, %s99
      %s117 = sphi 0, %s117
      %s119 = sphi 0, %s117
      %s120 = sphi 0, %s119
      %s134 = sphi 0, %s120
      %s138 = sphi 0, %s138
      %s140 = sphi 0, %s138
      %s141 = sphi 0, %s140
      %s155 = sphi 0, %s141
      %s161 = sphi 0, %s163
      %s164 = sphi 0, %s161
      %s165 = sphi 0, %s164
      %s181 = sphi 0, %s165
    $region4: #{tpu_custom_call.1} parent=1 // loop_header_branch
      %23 = sbr.rel (%p21) target = $region8
    $region5: #{tpu_custom_call.1} parent=1 // loop_body
      %s25 = ssub.s32 %s20, 1
      %s26 = ssub.s32 %s20, 2
      %s27 = sadd.s32 %s20, 1
      %s28 = ssub.s32 %s20, %s27
      %p29 = scmp.eq.s32.totalorder %s28, 0
      %s31 = sadd.s32 %s30, 1
      %s32 = scalar_select %p29, %s30, %s31
      %p35 = pneg %p29
      %p36 = scmp.eq.s32.totalorder %s20, 1
      %p37 = por %p35, %p36
      %p38 = scmp.ne.s32.totalorder %s30, %s33
      %p39 = scmp.eq.s32.totalorder %s20, 0
      %p40 = por %p38, %p39
      %p41 = scmp.ne.s32.totalorder %s30, %s33
      %p42 = scmp.eq.s32.totalorder %s25, 1
      %p43 = por %p41, %p42
      %p44 = scmp.ne.s32.totalorder %s33, %s34
      %p45 = scmp.eq.s32.totalorder %s25, 0
      %p46 = por %p44, %p45
      %p47 = scmp.ne.s32.totalorder %s33, %s34
      %p48 = scmp.eq.s32.totalorder %s26, 1
      %p49 = por %p47, %p48
      %p51 = scmp.ne.s32.totalorder %s34, %s50
      %p52 = scmp.eq.s32.totalorder %s26, 0
      %p53 = por %p51, %p52
      %s55 = sadd.s32 %s54, 1
      %p58 = scmp.eq.s32.totalorder %s20, 1
      %p59 = scmp.ne.s32.totalorder %s54, %s56
      %p60 = scmp.eq.s32.totalorder %s20, 0
      %p61 = por %p59, %p60
      %p62 = scmp.ne.s32.totalorder %s54, %s56
      %p63 = scmp.eq.s32.totalorder %s25, 1
      %p64 = por %p62, %p63
      %p65 = scmp.ne.s32.totalorder %s56, %s57
      %p66 = scmp.eq.s32.totalorder %s25, 0
      %p67 = por %p65, %p66
      %p68 = scmp.ne.s32.totalorder %s56, %s57
      %p69 = scmp.eq.s32.totalorder %s26, 1
      %p70 = por %p68, %p69
      %p72 = scmp.ne.s32.totalorder %s57, %s71
      %p73 = scmp.eq.s32.totalorder %s26, 0
      %p74 = por %p72, %p73
      %s76 = sadd.s32 %s75, 1
      %p79 = scmp.eq.s32.totalorder %s20, 1
      %p80 = scmp.ne.s32.totalorder %s75, %s77
      %p81 = scmp.eq.s32.totalorder %s20, 0
      %p82 = por %p80, %p81
      %p83 = scmp.ne.s32.totalorder %s75, %s77
      %p84 = scmp.eq.s32.totalorder %s25, 1
      %p85 = por %p83, %p84
      %p86 = scmp.ne.s32.totalorder %s77, %s78
      %p87 = scmp.eq.s32.totalorder %s25, 0
      %p88 = por %p86, %p87
      %p89 = scmp.ne.s32.totalorder %s77, %s78
      %p90 = scmp.eq.s32.totalorder %s26, 1
      %p91 = por %p89, %p90
      %p93 = scmp.ne.s32.totalorder %s78, %s92
      %p94 = scmp.eq.s32.totalorder %s26, 0
      %p95 = por %p93, %p94
      %s97 = sadd.s32 %s96, 1
      %p100 = scmp.eq.s32.totalorder %s20, 1
      %p101 = scmp.ne.s32.totalorder %s96, %s98
      %p102 = scmp.eq.s32.totalorder %s20, 0
      %p103 = por %p101, %p102
      %p104 = scmp.ne.s32.totalorder %s96, %s98
      %p105 = scmp.eq.s32.totalorder %s25, 1
      %p106 = por %p104, %p105
      %p107 = scmp.ne.s32.totalorder %s98, %s99
      %p108 = scmp.eq.s32.totalorder %s25, 0
      %p109 = por %p107, %p108
      %p110 = scmp.ne.s32.totalorder %s98, %s99
      %p111 = scmp.eq.s32.totalorder %s26, 1
      %p112 = por %p110, %p111
      %p114 = scmp.ne.s32.totalorder %s99, %s113
      %p115 = scmp.eq.s32.totalorder %s26, 0
      %p116 = por %p114, %p115
      %s118 = sadd.s32 %s117, 1
      %p121 = scmp.eq.s32.totalorder %s20, 1
      %p122 = scmp.ne.s32.totalorder %s117, %s119
      %p123 = scmp.eq.s32.totalorder %s20, 0
      %p124 = por %p122, %p123
      %p125 = scmp.ne.s32.totalorder %s117, %s119
      %p126 = scmp.eq.s32.totalorder %s25, 1
      %p127 = por %p125, %p126
      %p128 = scmp.ne.s32.totalorder %s119, %s120
      %p129 = scmp.eq.s32.totalorder %s25, 0
      %p130 = por %p128, %p129
      %p131 = scmp.ne.s32.totalorder %s119, %s120
      %p132 = scmp.eq.s32.totalorder %s26, 1
      %p133 = por %p131, %p132
      %p135 = scmp.ne.s32.totalorder %s120, %s134
      %p136 = scmp.eq.s32.totalorder %s26, 0
      %p137 = por %p135, %p136
      %s139 = sadd.s32 %s138, 1
      %p142 = scmp.eq.s32.totalorder %s20, 1
      %p143 = scmp.ne.s32.totalorder %s138, %s140
      %p144 = scmp.eq.s32.totalorder %s20, 0
      %p145 = por %p143, %p144
      %p146 = scmp.ne.s32.totalorder %s138, %s140
      %p147 = scmp.eq.s32.totalorder %s25, 1
      %p148 = por %p146, %p147
      %p149 = scmp.ne.s32.totalorder %s140, %s141
      %p150 = scmp.eq.s32.totalorder %s25, 0
      %p151 = por %p149, %p150
      %p152 = scmp.ne.s32.totalorder %s140, %s141
      %p153 = scmp.eq.s32.totalorder %s26, 1
      %p154 = por %p152, %p153
      %p156 = scmp.ne.s32.totalorder %s141, %s155
      %p157 = scmp.eq.s32.totalorder %s26, 0
      %p158 = por %p156, %p157
      %s159 = ssub.s32 %s20, %s27
      %p160 = scmp.eq.s32.totalorder %s159, 0
      %s162 = sadd.s32 %s161, 1
      %s163 = scalar_select %p160, %s161, %s162
      %p166 = pneg %p160
      %p167 = scmp.eq.s32.totalorder %s20, 1
      %p168 = por %p166, %p167
      %p169 = scmp.ne.s32.totalorder %s161, %s164
      %p170 = scmp.eq.s32.totalorder %s20, 0
      %p171 = por %p169, %p170
      %p172 = scmp.ne.s32.totalorder %s161, %s164
      %p173 = scmp.eq.s32.totalorder %s25, 1
      %p174 = por %p172, %p173
      %p175 = scmp.ne.s32.totalorder %s164, %s165
      %p176 = scmp.eq.s32.totalorder %s25, 0
      %p177 = por %p175, %p176
      %p178 = scmp.ne.s32.totalorder %s164, %s165
      %p179 = scmp.eq.s32.totalorder %s26, 1
      %p180 = por %p178, %p179
      %p182 = scmp.ne.s32.totalorder %s165, %s181
      %p183 = scmp.eq.s32.totalorder %s26, 0
      %p184 = por %p182, %p183
      %p185 = scmp.le.s32.totalorder 1, %s20
      %p186 = scmp.lt.s32.totalorder %s20, 3
      %p187 = pnand %p185, %p186
      %p188 = pneg %p187
      // Predicated region
      $region9: #{tpu_custom_call.1} parent=5 // pred_check
        _
      $region10: #{tpu_custom_call.1} parent=5 // pred_check_branch
        %190 = sbr.rel (%p187) target = $region12
      $region11: #{tpu_custom_call.1} parent=5 // pred_region
        %s191 = ssub.s32 %s20, 1
        // Predicated region
        $region13: #{tpu_custom_call.1} parent=11 // pred_check
          %p192 = pneg %p67
        $region14: #{tpu_custom_call.1} parent=11 // pred_check_branch
          %194 = sbr.rel (%p192) target = $region16
        $region15: #{tpu_custom_call.1} parent=11 // pred_region
          %s196 = ssub.s32 1024, 1024
          %197 = vsyncadd [#allocation6], %s196
          %s198 = sshll.u32 [#allocation5], 4
          %s199 = int_to_ptr.vmem [resolvable:$true] %s198
          %204 = dma.hbm_to_vmem [thread:$0]  %s1, 1024, %s199, [#allocation6], 64, 64, 4
        $region16: #{tpu_custom_call.1} parent=11 // pred_fallthru
          _
        // Predicated region
        $region17: #{tpu_custom_call.1} parent=11 // pred_check
          %p205 = pneg %p88
        $region18: #{tpu_custom_call.1} parent=11 // pred_check_branch
          %207 = sbr.rel (%p205) target = $region20
        $region19: #{tpu_custom_call.1} parent=11 // pred_region
          %s209 = ssub.s32 256, 256
          %210 = vsyncadd [#allocation6], %s209
          %s211 = sshll.u32 [#allocation7], 4
          %s212 = int_to_ptr.vmem [resolvable:$true] %s211
          %217 = dma.hbm_to_vmem [thread:$0]  %s2, 256, %s212, [#allocation6], 64, 64, 4
        $region20: #{tpu_custom_call.1} parent=11 // pred_fallthru
          _
        // Predicated region
        $region21: #{tpu_custom_call.1} parent=11 // pred_check
          %p218 = pneg %p109
        $region22: #{tpu_custom_call.1} parent=11 // pred_check_branch
          %220 = sbr.rel (%p218) target = $region24
        $region23: #{tpu_custom_call.1} parent=11 // pred_region
          %s222 = ssub.s32 256, 256
          %223 = vsyncadd [#allocation9], %s222
          %s224 = sshll.u32 [#allocation8], 4
          %s225 = int_to_ptr.vmem [resolvable:$true] %s224
          %230 = dma.hbm_to_vmem [thread:$0]  %s3, 256, %s225, [#allocation9], 128, 128, 8
        $region24: #{tpu_custom_call.1} parent=11 // pred_fallthru
          _
        // Predicated region
        $region25: #{tpu_custom_call.1} parent=11 // pred_check
          %p231 = pneg %p130
        $region26: #{tpu_custom_call.1} parent=11 // pred_check_branch
          %233 = sbr.rel (%p231) target = $region28
        $region27: #{tpu_custom_call.1} parent=11 // pred_region
          _
        $region28: #{tpu_custom_call.1} parent=11 // pred_fallthru
          _
        // Predicated region
        $region29: #{tpu_custom_call.1} parent=11 // pred_check
          %p234 = pneg %p151
        $region30: #{tpu_custom_call.1} parent=11 // pred_check_branch
          %236 = sbr.rel (%p234) target = $region32
        $region31: #{tpu_custom_call.1} parent=11 // pred_region
          _
        $region32: #{tpu_custom_call.1} parent=11 // pred_fallthru
          _
      $region12: #{tpu_custom_call.1} parent=5 // pred_fallthru
        _
      %p237 = scmp.lt.s32.totalorder %s20, 2
      // Predicated region
      $region33: #{tpu_custom_call.1} parent=5 // pred_check
        %p238 = pneg %p237
      $region34: #{tpu_custom_call.1} parent=5 // pred_check_branch
        %240 = sbr.rel (%p238) target = $region36
      $region35: #{tpu_custom_call.1} parent=5 // pred_region
        // Predicated region
        $region37: #{tpu_custom_call.1} parent=35 // pred_check
          %p241 = pneg %p40
        $region38: #{tpu_custom_call.1} parent=35 // pred_check_branch
          %243 = sbr.rel (%p241) target = $region40
        $region39: #{tpu_custom_call.1} parent=35 // pred_region
          %s244 = sand.u32 %s30, 1
          %s245 = scalar_lea.sflag [#allocation3], %s244
          %s246 = sand.u32 %s30, 1
          %s247 = smul.addr %s246, 128
          %s248 = scalar_lea.vmem [#allocation2], %s247
          %s250 = ssub.s32 2048, 2048
          %251 = vsyncadd %s245, %s250
          %s252 = smul.addr %s20, 16
          %s253 = smul.addr %s252, 128
          %s254 = scalar_lea.hbm %s0, %s253
          %s255 = sshll.u32 %s248, 4
          %s256 = int_to_ptr.vmem [resolvable:$true] %s255
          %261 = dma.hbm_to_vmem [thread:$0]  %s254, 2048, %s256, %s245, 128, 128, 8
        $region40: #{tpu_custom_call.1} parent=35 // pred_fallthru
          _
      $region36: #{tpu_custom_call.1} parent=5 // pred_fallthru
        _
      %p262 = scmp.le.s32.totalorder 1, %s20
      %p263 = scmp.lt.s32.totalorder %s20, 3
      %p264 = pnand %p262, %p263
      %p265 = pneg %p264
      // Predicated region
      $region41: #{tpu_custom_call.1} parent=5 // pred_check
        _
      $region42: #{tpu_custom_call.1} parent=5 // pred_check_branch
        %267 = sbr.rel (%p264) target = $region44
      $region43: #{tpu_custom_call.1} parent=5 // pred_region
        %s268 = ssub.s32 %s20, 1
        %s269 = sand.u32 %s33, 1
        %s270 = scalar_lea.sflag [#allocation3], %s269
        %s271 = sand.u32 %s33, 1
        %s272 = smul.addr %s271, 128
        %s273 = scalar_lea.vmem [#allocation2], %s272
        // Predicated region
        $region45: #{tpu_custom_call.1} parent=43 // pred_check
          %p274 = pneg %p46
        $region46: #{tpu_custom_call.1} parent=43 // pred_check_branch
          %276 = sbr.rel (%p274) target = $region48
        $region47: #{tpu_custom_call.1} parent=43 // pred_region
          %277 = dma.done %s270, 2048
        $region48: #{tpu_custom_call.1} parent=43 // pred_fallthru
          _
        // Predicated region
        $region49: #{tpu_custom_call.1} parent=43 // pred_check
          %p278 = pneg %p67
        $region50: #{tpu_custom_call.1} parent=43 // pred_check_branch
          %280 = sbr.rel (%p278) target = $region52
        $region51: #{tpu_custom_call.1} parent=43 // pred_region
          %281 = dma.done [#allocation6], 1024
        $region52: #{tpu_custom_call.1} parent=43 // pred_fallthru
          _
        // Predicated region
        $region53: #{tpu_custom_call.1} parent=43 // pred_check
          %p282 = pneg %p88
        $region54: #{tpu_custom_call.1} parent=43 // pred_check_branch
          %284 = sbr.rel (%p282) target = $region56
        $region55: #{tpu_custom_call.1} parent=43 // pred_region
          %285 = dma.done [#allocation6], 256
        $region56: #{tpu_custom_call.1} parent=43 // pred_fallthru
          _
        // Predicated region
        $region57: #{tpu_custom_call.1} parent=43 // pred_check
          %p286 = pneg %p109
        $region58: #{tpu_custom_call.1} parent=43 // pred_check_branch
          %288 = sbr.rel (%p286) target = $region60
        $region59: #{tpu_custom_call.1} parent=43 // pred_region
          %289 = dma.done [#allocation9], 256
        $region60: #{tpu_custom_call.1} parent=43 // pred_fallthru
          _
        %s290 = sand.u32 %s33, 1
        %s291 = scalar_lea.sflag [#allocation3], %s290
        %s292 = sand.u32 %s33, 1
        %s293 = smul.addr %s292, 128
        %s294 = scalar_lea.vmem [#allocation2], %s293
        %p295 = pneg %p46
        %p296 = pneg %p43
        %p297 = pneg %p67
        %p298 = pneg %p64
        %p299 = pneg %p88
        %p300 = pneg %p85
        %p301 = pneg %p109
        %p302 = pneg %p106
        %p303 = pneg %p130
        %p304 = pneg %p127
        %p305 = pneg %p151
        %p306 = pneg %p148
        %p307 = pneg %p177
        %p308 = pneg %p174
        %s309 = sand.u32 %s164, 1
        %s310 = scalar_lea.sflag [#allocation4], %s309
        %s311 = sand.u32 %s164, 1
        %s312 = smul.addr %s311, 128
        %s313 = scalar_lea.vmem [#allocation10], %s312
        %v315 = vld [vmem:[%s273] sm:$0xff]
        %v316 = vld [vmem:[%s273 + $0x8] sm:$0xff]
        %v317 = vld [vmem:[%s273 + $0x10] sm:$0xff]
        %v318 = vld [vmem:[%s273 + $0x18] sm:$0xff]
        %v319 = vld [vmem:[%s273 + $0x20] sm:$0xff]
        %v320 = vld [vmem:[%s273 + $0x28] sm:$0xff]
        %v321 = vld [vmem:[%s273 + $0x30] sm:$0xff]
        %v322 = vld [vmem:[%s273 + $0x38] sm:$0xff]
        %v323 = vld [vmem:[%s273 + $0x40] sm:$0xff]
        %v324 = vld [vmem:[%s273 + $0x48] sm:$0xff]
        %v325 = vld [vmem:[%s273 + $0x50] sm:$0xff]
        %v326 = vld [vmem:[%s273 + $0x58] sm:$0xff]
        %v327 = vld [vmem:[%s273 + $0x60] sm:$0xff]
        %v328 = vld [vmem:[%s273 + $0x68] sm:$0xff]
        %v329 = vld [vmem:[%s273 + $0x70] sm:$0xff]
        %v330 = vld [vmem:[%s273 + $0x78] sm:$0xff]
        %v331 = vld [vmem:[#allocation5] sm:$0xf]
        %v332 = vld [vmem:[#allocation5 + $0x4] sm:$0xf]
        %v333 = vld [vmem:[#allocation5 + $0x8] sm:$0xf]
        %v334 = vld [vmem:[#allocation5 + $0xc] sm:$0xf]
        %v335 = vld [vmem:[#allocation5 + $0x10] sm:$0xf]
        %v336 = vld [vmem:[#allocation5 + $0x14] sm:$0xf]
        %v337 = vld [vmem:[#allocation5 + $0x18] sm:$0xf]
        %v338 = vld [vmem:[#allocation5 + $0x1c] sm:$0xf]
        %v339 = vld [vmem:[#allocation5 + $0x20] sm:$0xf]
        %v340 = vld [vmem:[#allocation5 + $0x24] sm:$0xf]
        %v341 = vld [vmem:[#allocation5 + $0x28] sm:$0xf]
        %v342 = vld [vmem:[#allocation5 + $0x2c] sm:$0xf]
        %v343 = vld [vmem:[#allocation5 + $0x30] sm:$0xf]
        %v344 = vld [vmem:[#allocation5 + $0x34] sm:$0xf]
        %v345 = vld [vmem:[#allocation5 + $0x38] sm:$0xf]
        %v346 = vld [vmem:[#allocation5 + $0x3c] sm:$0xf]
        %v347 = vpack.c.bf16 %v316, %v315
        %v348 = vpack.c.bf16 %v318, %v317
        %v349 = vpack.c.bf16 %v320, %v319
        %v350 = vpack.c.bf16 %v322, %v321
        %v351 = vpack.c.bf16 %v324, %v323
        %v352 = vpack.c.bf16 %v326, %v325
        %v353 = vpack.c.bf16 %v328, %v327
        %v354 = vpack.c.bf16 %v330, %v329
        %v371 = vunpack.c.l.b16 %v331
        %v372 = vunpack.c.l.b16 %v332
        %v373 = vunpack.c.l.b16 %v333
        %v374 = vunpack.c.l.b16 %v334
        %v375 = vunpack.c.l.b16 %v335
        %v376 = vunpack.c.l.b16 %v336
        %v377 = vunpack.c.l.b16 %v337
        %v378 = vunpack.c.l.b16 %v338
        %v379 = vunpack.c.l.b16 %v339
        %v380 = vunpack.c.l.b16 %v340
        %v381 = vunpack.c.l.b16 %v341
        %v382 = vunpack.c.l.b16 %v342
        %v383 = vunpack.c.l.b16 %v343
        %v384 = vunpack.c.l.b16 %v344
        %v385 = vunpack.c.l.b16 %v345
        %v386 = vunpack.c.l.b16 %v346
        %v387 = vpack.c.b16 %v372, %v371
        %v388 = vpack.c.b16 %v374, %v373
        %v389 = vpack.c.b16 %v376, %v375
        %v390 = vpack.c.b16 %v378, %v377
        %v391 = vpack.c.b16 %v380, %v379
        %v392 = vpack.c.b16 %v382, %v381
        %v393 = vpack.c.b16 %v384, %v383
        %v394 = vpack.c.b16 %v386, %v385
        %403 = vmatprep.subr.bf16.mxu0 0
        %404 = vmatpush1.bf16.msra.mxu0 %v347
        %405 = vmatprep.subr.bf16.mxu0 0
        %406 = vmatpush1.bf16.msra.mxu0 %v348
        %407 = vmatprep.subr.bf16.mxu0 0
        %408 = vmatpush1.bf16.msra.mxu0 %v349
        %409 = vmatprep.subr.bf16.mxu0 0
        %410 = vmatpush1.bf16.msra.mxu0 %v350
        %411 = vmatprep.subr.bf16.mxu0 0
        %412 = vmatpush1.bf16.msra.mxu0 %v351
        %413 = vmatprep.subr.bf16.mxu0 0
        %414 = vmatpush1.bf16.msra.mxu0 %v352
        %415 = vmatprep.subr.bf16.mxu0 0
        %416 = vmatpush1.bf16.msra.mxu0 %v353
        %417 = vmatprep.subr.bf16.mxu0 0
        %418 = vmatpush1.bf16.msra.mxu0 %v354
        %419 = vmatprep.subr.bf16.mxu0 0
        %420 = vmatpush1.bf16.msra.mxu0 0
        %421 = vmatprep.subr.bf16.mxu0 0
        %422 = vmatpush1.bf16.msra.mxu0 0
        %423 = vmatprep.subr.bf16.mxu0 0
        %424 = vmatpush1.bf16.msra.mxu0 0
        %425 = vmatprep.subr.bf16.mxu0 0
        %426 = vmatpush1.bf16.msra.mxu0 0
        %427 = vmatprep.subr.bf16.mxu0 0
        %428 = vmatpush1.bf16.msra.mxu0 0
        %429 = vmatprep.subr.bf16.mxu0 0
        %430 = vmatpush1.bf16.msra.mxu0 0
        %431 = vmatprep.subr.bf16.mxu0 0
        %432 = vmatpush1.bf16.msra.mxu0 0
        %433 = vmatprep.subr.bf16.mxu0 0
        %434 = vmatpush1.bf16.msra.mxu0 0
        %435 = vmatprep.mubr.bf16.mxu0 0
        %436 = vmatmul.mubr.bf16.gmra.mrb[0].mxu0 %v387
        %v437 = vpop.f32.mrb[0].mxu0
        %v438 = vadd.f32 0.0, %v437
        %v439 = vpop.f32.mrb[0].mxu0
        %v440 = vpop.f32.mrb[0].mxu0
        %v441 = vadd.f32 0.0, %v440
        %v442 = vpop.f32.mrb[0].mxu0
        %443 = vmatprep.mubr.bf16.mxu0 0
        %444 = vmatmul.mubr.bf16.gmra.mrb[0].mxu0 %v388
        %v445 = vpop.f32.mrb[0].mxu0
        %v446 = vadd.f32 0.0, %v445
        %v447 = vpop.f32.mrb[0].mxu0
        %v448 = vpop.f32.mrb[0].mxu0
        %v449 = vadd.f32 0.0, %v448
        %v450 = vpop.f32.mrb[0].mxu0
        %451 = vmatprep.mubr.bf16.mxu0 0
        %452 = vmatmul.mubr.bf16.gmra.mrb[0].mxu0 %v389
        %v453 = vpop.f32.mrb[0].mxu0
        %v454 = vadd.f32 0.0, %v453
        %v455 = vpop.f32.mrb[0].mxu0
        %v456 = vpop.f32.mrb[0].mxu0
        %v457 = vadd.f32 0.0, %v456
        %v458 = vpop.f32.mrb[0].mxu0
        %459 = vmatprep.mubr.bf16.mxu0 0
        %460 = vmatmul.mubr.bf16.gmra.mrb[0].mxu0 %v390
        %v461 = vpop.f32.mrb[0].mxu0
        %v462 = vadd.f32 0.0, %v461
        %v463 = vpop.f32.mrb[0].mxu0
        %v464 = vpop.f32.mrb[0].mxu0
        %v465 = vadd.f32 0.0, %v464
        %v466 = vpop.f32.mrb[0].mxu0
        %467 = vmatprep.mubr.bf16.mxu0 0
        %468 = vmatmul.mubr.bf16.gmra.mrb[0].mxu0 %v391
        %v469 = vpop.f32.mrb[0].mxu0
        %v470 = vadd.f32 0.0, %v469
        %v471 = vpop.f32.mrb[0].mxu0
        %v472 = vpop.f32.mrb[0].mxu0
        %v473 = vadd.f32 0.0, %v472
        %v474 = vpop.f32.mrb[0].mxu0
        %475 = vmatprep.mubr.bf16.mxu0 0
        %476 = vmatmul.mubr.bf16.gmra.mrb[0].mxu0 %v392
        %v477 = vpop.f32.mrb[0].mxu0
        %v478 = vadd.f32 0.0, %v477
        %v479 = vpop.f32.mrb[0].mxu0
        %v480 = vpop.f32.mrb[0].mxu0
        %v481 = vadd.f32 0.0, %v480
        %v482 = vpop.f32.mrb[0].mxu0
        %483 = vmatprep.mubr.bf16.mxu0 0
        %484 = vmatmul.mubr.bf16.gmra.mrb[0].mxu0 %v393
        %v485 = vpop.f32.mrb[0].mxu0
        %v486 = vadd.f32 0.0, %v485
        %v487 = vpop.f32.mrb[0].mxu0
        %v488 = vpop.f32.mrb[0].mxu0
        %v489 = vadd.f32 0.0, %v488
        %v490 = vpop.f32.mrb[0].mxu0
        %491 = vmatprep.mubr.bf16.mxu0 0
        %492 = vmatmul.mubr.bf16.gmra.mrb[0].mxu0 %v394
        %v493 = vpop.f32.mrb[0].mxu0
        %v494 = vadd.f32 0.0, %v493
        %v495 = vpop.f32.mrb[0].mxu0
        %v496 = vpop.f32.mrb[0].mxu0
        %v497 = vadd.f32 0.0, %v496
        %v498 = vpop.f32.mrb[0].mxu0
        %499 = vdwg.mxu0
        %v500 = vpack.c.bf16 %v441, %v438
        %v501 = vpack.c.bf16 %v449, %v446
        %v502 = vpack.c.bf16 %v457, %v454
        %v503 = vpack.c.bf16 %v465, %v462
        %v504 = vpack.c.bf16 %v473, %v470
        %v505 = vpack.c.bf16 %v481, %v478
        %v506 = vpack.c.bf16 %v489, %v486
        %v507 = vpack.c.bf16 %v497, %v494
        %v508 = vld [vmem:[#allocation7] sm:$0xf]
        %v509 = vld [vmem:[#allocation7 + $0x4] sm:$0xf]
        %v510 = vld [vmem:[#allocation7 + $0x8] sm:$0xf]
        %v511 = vld [vmem:[#allocation7 + $0xc] sm:$0xf]
        %v516 = vunpack.c.l.b16 %v508
        %v517 = vunpack.c.l.b16 %v509
        %v518 = vunpack.c.l.b16 %v510
        %v519 = vunpack.c.l.b16 %v511
        %v520 = vpack.c.b16 %v517, %v516
        %v521 = vpack.c.b16 %v519, %v518
        %vm524 = vcmask 261120
        %v526 = vsel %vm524, %v500, 0
        %v529 = vsel %vm524, %v501, 0
        %v532 = vsel %vm524, %v502, 0
        %v535 = vsel %vm524, %v503, 0
        %v538 = vsel %vm524, %v504, 0
        %v541 = vsel %vm524, %v505, 0
        %v544 = vsel %vm524, %v506, 0
        %v547 = vsel %vm524, %v507, 0
        %549 = vmatprep.subr.bf16.mxu0 0
        %550 = vmatpush1.bf16.msra.mxu0 %v520
        %551 = vmatprep.subr.bf16.mxu0 0
        %552 = vmatpush1.bf16.msra.mxu0 %v521
        %553 = vmatprep.subr.bf16.mxu0 0
        %554 = vmatpush1.bf16.msra.mxu0 0
        %555 = vmatprep.subr.bf16.mxu0 0
        %556 = vmatpush1.bf16.msra.mxu0 0
        %557 = vmatprep.subr.bf16.mxu0 0
        %558 = vmatpush1.bf16.msra.mxu0 0
        %559 = vmatprep.subr.bf16.mxu0 0
        %560 = vmatpush1.bf16.msra.mxu0 0
        %561 = vmatprep.subr.bf16.mxu0 0
        %562 = vmatpush1.bf16.msra.mxu0 0
        %563 = vmatprep.subr.bf16.mxu0 0
        %564 = vmatpush1.bf16.msra.mxu0 0
        %565 = vmatprep.subr.bf16.mxu0 0
        %566 = vmatpush1.bf16.msra.mxu0 0
        %567 = vmatprep.subr.bf16.mxu0 0
        %568 = vmatpush1.bf16.msra.mxu0 0
        %569 = vmatprep.subr.bf16.mxu0 0
        %570 = vmatpush1.bf16.msra.mxu0 0
        %571 = vmatprep.subr.bf16.mxu0 0
        %572 = vmatpush1.bf16.msra.mxu0 0
        %573 = vmatprep.subr.bf16.mxu0 0
        %574 = vmatpush1.bf16.msra.mxu0 0
        %575 = vmatprep.subr.bf16.mxu0 0
        %576 = vmatpush1.bf16.msra.mxu0 0
        %577 = vmatprep.subr.bf16.mxu0 0
        %578 = vmatpush1.bf16.msra.mxu0 0
        %579 = vmatprep.subr.bf16.mxu0 0
        %580 = vmatpush1.bf16.msra.mxu0 0
        %581 = vmatprep.mubr.bf16.mxu0 0
        %582 = vmatmul.mubr.bf16.gmra.mrb[0].mxu0 %v526
        %v583 = vpop.f32.mrb[0].mxu0
        %v584 = vadd.f32 0.0, %v583
        %v585 = vpop.f32.mrb[0].mxu0
        %v586 = vpop.f32.mrb[0].mxu0
        %v587 = vadd.f32 0.0, %v586
        %v588 = vpop.f32.mrb[0].mxu0
        %589 = vmatprep.mubr.bf16.mxu0 0
        %590 = vmatmul.mubr.bf16.gmra.mrb[0].mxu0 %v529
        %v591 = vpop.f32.mrb[0].mxu0
        %v592 = vadd.f32 0.0, %v591
        %v593 = vpop.f32.mrb[0].mxu0
        %v594 = vpop.f32.mrb[0].mxu0
        %v595 = vadd.f32 0.0, %v594
        %v596 = vpop.f32.mrb[0].mxu0
        %597 = vmatprep.mubr.bf16.mxu0 0
        %598 = vmatmul.mubr.bf16.gmra.mrb[0].mxu0 %v532
        %v599 = vpop.f32.mrb[0].mxu0
        %v600 = vadd.f32 0.0, %v599
        %v601 = vpop.f32.mrb[0].mxu0
        %v602 = vpop.f32.mrb[0].mxu0
        %v603 = vadd.f32 0.0, %v602
        %v604 = vpop.f32.mrb[0].mxu0
        %605 = vmatprep.mubr.bf16.mxu0 0
        %606 = vmatmul.mubr.bf16.gmra.mrb[0].mxu0 %v535
        %v607 = vpop.f32.mrb[0].mxu0
        %v608 = vadd.f32 0.0, %v607
        %v609 = vpop.f32.mrb[0].mxu0
        %v610 = vpop.f32.mrb[0].mxu0
        %v611 = vadd.f32 0.0, %v610
        %v612 = vpop.f32.mrb[0].mxu0
        %613 = vmatprep.mubr.bf16.mxu0 0
        %614 = vmatmul.mubr.bf16.gmra.mrb[0].mxu0 %v538
        %v615 = vpop.f32.mrb[0].mxu0
        %v616 = vadd.f32 0.0, %v615
        %v617 = vpop.f32.mrb[0].mxu0
        %v618 = vpop.f32.mrb[0].mxu0
        %v619 = vadd.f32 0.0, %v618
        %v620 = vpop.f32.mrb[0].mxu0
        %621 = vmatprep.mubr.bf16.mxu0 0
        %622 = vmatmul.mubr.bf16.gmra.mrb[0].mxu0 %v541
        %v623 = vpop.f32.mrb[0].mxu0
        %v624 = vadd.f32 0.0, %v623
        %v625 = vpop.f32.mrb[0].mxu0
        %v626 = vpop.f32.mrb[0].mxu0
        %v627 = vadd.f32 0.0, %v626
        %v628 = vpop.f32.mrb[0].mxu0
        %629 = vmatprep.mubr.bf16.mxu0 0
        %630 = vmatmul.mubr.bf16.gmra.mrb[0].mxu0 %v544
        %v631 = vpop.f32.mrb[0].mxu0
        %v632 = vadd.f32 0.0, %v631
        %v633 = vpop.f32.mrb[0].mxu0
        %v634 = vpop.f32.mrb[0].mxu0
        %v635 = vadd.f32 0.0, %v634
        %v636 = vpop.f32.mrb[0].mxu0
        %637 = vmatprep.mubr.bf16.mxu0 0
        %638 = vmatmul.mubr.bf16.gmra.mrb[0].mxu0 %v547
        %v639 = vpop.f32.mrb[0].mxu0
        %v640 = vadd.f32 0.0, %v639
        %v641 = vpop.f32.mrb[0].mxu0
        %v642 = vpop.f32.mrb[0].mxu0
        %v643 = vadd.f32 0.0, %v642
        %v644 = vpop.f32.mrb[0].mxu0
        %645 = vdwg.mxu0
        %v646 = vld [vmem:[#allocation8] sm:$0xff]
        %v647 = vld [vmem:[#allocation8 + $0x8] sm:$0xff]
        %v648 = vadd.f32 %v584, %v646
        %v649 = vadd.f32 %v587, %v647
        %v650 = vadd.f32 %v592, %v646
        %v651 = vadd.f32 %v595, %v647
        %v652 = vadd.f32 %v600, %v646
        %v653 = vadd.f32 %v603, %v647
        %v654 = vadd.f32 %v608, %v646
        %v655 = vadd.f32 %v611, %v647
        %v656 = vadd.f32 %v616, %v646
        %v657 = vadd.f32 %v619, %v647
        %v658 = vadd.f32 %v624, %v646
        %v659 = vadd.f32 %v627, %v647
        %v660 = vadd.f32 %v632, %v646
        %v661 = vadd.f32 %v635, %v647
        %v662 = vadd.f32 %v640, %v646
        %v663 = vadd.f32 %v643, %v647
        %680 = vrot.lane.b32.xlu0 %v648, 96
        %v681 = vpop.permute.xlu0 %680
        %682 = vrot.lane.b32.xlu0 %v649, 96
        %v683 = vpop.permute.xlu0 %682
        %684 = vrot.lane.b32.xlu0 %v650, 96
        %v685 = vpop.permute.xlu0 %684
        %686 = vrot.lane.b32.xlu0 %v651, 96
        %v687 = vpop.permute.xlu0 %686
        %688 = vrot.lane.b32.xlu0 %v652, 96
        %v689 = vpop.permute.xlu0 %688
        %690 = vrot.lane.b32.xlu0 %v653, 96
        %v691 = vpop.permute.xlu0 %690
        %692 = vrot.lane.b32.xlu0 %v654, 96
        %v693 = vpop.permute.xlu0 %692
        %694 = vrot.lane.b32.xlu0 %v655, 96
        %v695 = vpop.permute.xlu0 %694
        %696 = vrot.lane.b32.xlu0 %v656, 96
        %v697 = vpop.permute.xlu0 %696
        %698 = vrot.lane.b32.xlu0 %v657, 96
        %v699 = vpop.permute.xlu0 %698
        %700 = vrot.lane.b32.xlu0 %v658, 96
        %v701 = vpop.permute.xlu0 %700
        %702 = vrot.lane.b32.xlu0 %v659, 96
        %v703 = vpop.permute.xlu0 %702
        %704 = vrot.lane.b32.xlu0 %v660, 96
        %v705 = vpop.permute.xlu0 %704
        %706 = vrot.lane.b32.xlu0 %v661, 96
        %v707 = vpop.permute.xlu0 %706
        %708 = vrot.lane.b32.xlu0 %v662, 96
        %v709 = vpop.permute.xlu0 %708
        %710 = vrot.lane.b32.xlu0 %v663, 96
        %v711 = vpop.permute.xlu0 %710
        %v728 = vmul.f32 %v648, %v681
        %v729 = vmul.f32 %v649, %v683
        %v730 = vmul.f32 %v650, %v685
        %v731 = vmul.f32 %v651, %v687
        %v732 = vmul.f32 %v652, %v689
        %v733 = vmul.f32 %v653, %v691
        %v734 = vmul.f32 %v654, %v693
        %v735 = vmul.f32 %v655, %v695
        %v736 = vmul.f32 %v656, %v697
        %v737 = vmul.f32 %v657, %v699
        %v738 = vmul.f32 %v658, %v701
        %v739 = vmul.f32 %v659, %v703
        %v740 = vmul.f32 %v660, %v705
        %v741 = vmul.f32 %v661, %v707
        %v742 = vmul.f32 %v662, %v709
        %v743 = vmul.f32 %v663, %v711
        %v744 = vmax.f32 %v728, 0.0
        %v745 = vmax.f32 %v729, 0.0
        %v746 = vmax.f32 %v730, 0.0
        %v747 = vmax.f32 %v731, 0.0
        %v748 = vmax.f32 %v732, 0.0
        %v749 = vmax.f32 %v733, 0.0
        %v750 = vmax.f32 %v734, 0.0
        %v751 = vmax.f32 %v735, 0.0
        %v752 = vmax.f32 %v736, 0.0
        %v753 = vmax.f32 %v737, 0.0
        %v754 = vmax.f32 %v738, 0.0
        %v755 = vmax.f32 %v739, 0.0
        %v756 = vmax.f32 %v740, 0.0
        %v757 = vmax.f32 %v741, 0.0
        %v758 = vmax.f32 %v742, 0.0
        %v759 = vmax.f32 %v743, 0.0
        %v760 = vadd.f32 %v744, %v648
        %v761 = vadd.f32 %v745, %v649
        %v762 = vadd.f32 %v746, %v650
        %v763 = vadd.f32 %v747, %v651
        %v764 = vadd.f32 %v748, %v652
        %v765 = vadd.f32 %v749, %v653
        %v766 = vadd.f32 %v750, %v654
        %v767 = vadd.f32 %v751, %v655
        %v768 = vadd.f32 %v752, %v656
        %v769 = vadd.f32 %v753, %v657
        %v770 = vadd.f32 %v754, %v658
        %v771 = vadd.f32 %v755, %v659
        %v772 = vadd.f32 %v756, %v660
        %v773 = vadd.f32 %v757, %v661
        %v774 = vadd.f32 %v758, %v662
        %v775 = vadd.f32 %v759, %v663
        %v776 = vadd.f32 %v760, %v315
        %v777 = vadd.f32 %v761, %v316
        %v778 = vadd.f32 %v762, %v317
        %v779 = vadd.f32 %v763, %v318
        %v780 = vadd.f32 %v764, %v319
        %v781 = vadd.f32 %v765, %v320
        %v782 = vadd.f32 %v766, %v321
        %v783 = vadd.f32 %v767, %v322
        %v784 = vadd.f32 %v768, %v323
        %v785 = vadd.f32 %v769, %v324
        %v786 = vadd.f32 %v770, %v325
        %v787 = vadd.f32 %v771, %v326
        %v788 = vadd.f32 %v772, %v327
        %v789 = vadd.f32 %v773, %v328
        %v790 = vadd.f32 %v774, %v329
        %v791 = vadd.f32 %v775, %v330
        %v792 = vsel %vm524, %v776, 0.0
        %793 = vadd.xlane.f32.xlu0 %v792
        %v794 = vpop.xlane.xlu0 %793
        %v795 = vsel %vm524, %v777, 0.0
        %796 = vadd.xlane.f32.xlu0 %v795
        %v797 = vpop.xlane.xlu0 %796
        %v798 = vsel %vm524, %v778, 0.0
        %799 = vadd.xlane.f32.xlu0 %v798
        %v800 = vpop.xlane.xlu0 %799
        %v801 = vsel %vm524, %v779, 0.0
        %802 = vadd.xlane.f32.xlu0 %v801
        %v803 = vpop.xlane.xlu0 %802
        %v804 = vsel %vm524, %v780, 0.0
        %805 = vadd.xlane.f32.xlu0 %v804
        %v806 = vpop.xlane.xlu0 %805
        %v807 = vsel %vm524, %v781, 0.0
        %808 = vadd.xlane.f32.xlu0 %v807
        %v809 = vpop.xlane.xlu0 %808
        %v810 = vsel %vm524, %v782, 0.0
        %811 = vadd.xlane.f32.xlu0 %v810
        %v812 = vpop.xlane.xlu0 %811
        %v813 = vsel %vm524, %v783, 0.0
        %814 = vadd.xlane.f32.xlu0 %v813
        %v815 = vpop.xlane.xlu0 %814
        %v816 = vsel %vm524, %v784, 0.0
        %817 = vadd.xlane.f32.xlu0 %v816
        %v818 = vpop.xlane.xlu0 %817
        %v819 = vsel %vm524, %v785, 0.0
        %820 = vadd.xlane.f32.xlu0 %v819
        %v821 = vpop.xlane.xlu0 %820
        %v822 = vsel %vm524, %v786, 0.0
        %823 = vadd.xlane.f32.xlu0 %v822
        %v824 = vpop.xlane.xlu0 %823
        %v825 = vsel %vm524, %v787, 0.0
        %826 = vadd.xlane.f32.xlu0 %v825
        %v827 = vpop.xlane.xlu0 %826
        %v828 = vsel %vm524, %v788, 0.0
        %829 = vadd.xlane.f32.xlu0 %v828
        %v830 = vpop.xlane.xlu0 %829
        %v831 = vsel %vm524, %v789, 0.0
        %832 = vadd.xlane.f32.xlu0 %v831
        %v833 = vpop.xlane.xlu0 %832
        %v834 = vsel %vm524, %v790, 0.0
        %835 = vadd.xlane.f32.xlu0 %v834
        %v836 = vpop.xlane.xlu0 %835
        %v837 = vsel %vm524, %v791, 0.0
        %838 = vadd.xlane.f32.xlu0 %v837
        %v839 = vpop.xlane.xlu0 %838
        %v840 = vrcp.pop 32.0
        %v841 = vmul.f32 %v794, %v840
        %v842 = vmul.f32 %v797, %v840
        %v843 = vmul.f32 %v800, %v840
        %v844 = vmul.f32 %v803, %v840
        %v845 = vmul.f32 %v806, %v840
        %v846 = vmul.f32 %v809, %v840
        %v847 = vmul.f32 %v812, %v840
        %v848 = vmul.f32 %v815, %v840
        %v849 = vmul.f32 %v818, %v840
        %v850 = vmul.f32 %v821, %v840
        %v851 = vmul.f32 %v824, %v840
        %v852 = vmul.f32 %v827, %v840
        %v853 = vmul.f32 %v830, %v840
        %v854 = vmul.f32 %v833, %v840
        %v855 = vmul.f32 %v836, %v840
        %v856 = vmul.f32 %v839, %v840
        %v857 = vsub.f32 %v776, %v841
        %v858 = vsub.f32 %v777, %v842
        %v859 = vsub.f32 %v778, %v843
        %v860 = vsub.f32 %v779, %v844
        %v861 = vsub.f32 %v780, %v845
        %v862 = vsub.f32 %v781, %v846
        %v863 = vsub.f32 %v782, %v847
        %v864 = vsub.f32 %v783, %v848
        %v865 = vsub.f32 %v784, %v849
        %v866 = vsub.f32 %v785, %v850
        %v867 = vsub.f32 %v786, %v851
        %v868 = vsub.f32 %v787, %v852
        %v869 = vsub.f32 %v788, %v853
        %v870 = vsub.f32 %v789, %v854
        %v871 = vsub.f32 %v790, %v855
        %v872 = vsub.f32 %v791, %v856
        %v873 = vmul.f32 %v857, %v857
        %v874 = vmul.f32 %v858, %v858
        %v875 = vmul.f32 %v859, %v859
        %v876 = vmul.f32 %v860, %v860
        %v877 = vmul.f32 %v861, %v861
        %v878 = vmul.f32 %v862, %v862
        %v879 = vmul.f32 %v863, %v863
        %v880 = vmul.f32 %v864, %v864
        %v881 = vmul.f32 %v865, %v865
        %v882 = vmul.f32 %v866, %v866
        %v883 = vmul.f32 %v867, %v867
        %v884 = vmul.f32 %v868, %v868
        %v885 = vmul.f32 %v869, %v869
        %v886 = vmul.f32 %v870, %v870
        %v887 = vmul.f32 %v871, %v871
        %v888 = vmul.f32 %v872, %v872
        %v889 = vsel %vm524, %v873, 0.0
        %890 = vadd.xlane.f32.xlu0 %v889
        %v891 = vpop.xlane.xlu0 %890
        %v892 = vsel %vm524, %v874, 0.0
        %893 = vadd.xlane.f32.xlu0 %v892
        %v894 = vpop.xlane.xlu0 %893
        %v895 = vsel %vm524, %v875, 0.0
        %896 = vadd.xlane.f32.xlu0 %v895
        %v897 = vpop.xlane.xlu0 %896
        %v898 = vsel %vm524, %v876, 0.0
        %899 = vadd.xlane.f32.xlu0 %v898
        %v900 = vpop.xlane.xlu0 %899
        %v901 = vsel %vm524, %v877, 0.0
        %902 = vadd.xlane.f32.xlu0 %v901
        %v903 = vpop.xlane.xlu0 %902
        %v904 = vsel %vm524, %v878, 0.0
        %905 = vadd.xlane.f32.xlu0 %v904
        %v906 = vpop.xlane.xlu0 %905
        %v907 = vsel %vm524, %v879, 0.0
        %908 = vadd.xlane.f32.xlu0 %v907
        %v909 = vpop.xlane.xlu0 %908
        %v910 = vsel %vm524, %v880, 0.0
        %911 = vadd.xlane.f32.xlu0 %v910
        %v912 = vpop.xlane.xlu0 %911
        %v913 = vsel %vm524, %v881, 0.0
        %914 = vadd.xlane.f32.xlu0 %v913
        %v915 = vpop.xlane.xlu0 %914
        %v916 = vsel %vm524, %v882, 0.0
        %917 = vadd.xlane.f32.xlu0 %v916
        %v918 = vpop.xlane.xlu0 %917
        %v919 = vsel %vm524, %v883, 0.0
        %920 = vadd.xlane.f32.xlu0 %v919
        %v921 = vpop.xlane.xlu0 %920
        %v922 = vsel %vm524, %v884, 0.0
        %923 = vadd.xlane.f32.xlu0 %v922
        %v924 = vpop.xlane.xlu0 %923
        %v925 = vsel %vm524, %v885, 0.0
        %926 = vadd.xlane.f32.xlu0 %v925
        %v927 = vpop.xlane.xlu0 %926
        %v928 = vsel %vm524, %v886, 0.0
        %929 = vadd.xlane.f32.xlu0 %v928
        %v930 = vpop.xlane.xlu0 %929
        %v931 = vsel %vm524, %v887, 0.0
        %932 = vadd.xlane.f32.xlu0 %v931
        %v933 = vpop.xlane.xlu0 %932
        %v934 = vsel %vm524, %v888, 0.0
        %935 = vadd.xlane.f32.xlu0 %v934
        %v936 = vpop.xlane.xlu0 %935
        %v937 = vmul.f32 %v891, %v840
        %v938 = vmul.f32 %v894, %v840
        %v939 = vmul.f32 %v897, %v840
        %v940 = vmul.f32 %v900, %v840
        %v941 = vmul.f32 %v903, %v840
        %v942 = vmul.f32 %v906, %v840
        %v943 = vmul.f32 %v909, %v840
        %v944 = vmul.f32 %v912, %v840
        %v945 = vmul.f32 %v915, %v840
        %v946 = vmul.f32 %v918, %v840
        %v947 = vmul.f32 %v921, %v840
        %v948 = vmul.f32 %v924, %v840
        %v949 = vmul.f32 %v927, %v840
        %v950 = vmul.f32 %v930, %v840
        %v951 = vmul.f32 %v933, %v840
        %v952 = vmul.f32 %v936, %v840
        %v953 = vadd.f32 %v937, 1e-05
        %v954 = vadd.f32 %v938, 1e-05
        %v955 = vadd.f32 %v939, 1e-05
        %v956 = vadd.f32 %v940, 1e-05
        %v957 = vadd.f32 %v941, 1e-05
        %v958 = vadd.f32 %v942, 1e-05
        %v959 = vadd.f32 %v943, 1e-05
        %v960 = vadd.f32 %v944, 1e-05
        %v961 = vadd.f32 %v945, 1e-05
        %v962 = vadd.f32 %v946, 1e-05
        %v963 = vadd.f32 %v947, 1e-05
        %v964 = vadd.f32 %v948, 1e-05
        %v965 = vadd.f32 %v949, 1e-05
        %v966 = vadd.f32 %v950, 1e-05
        %v967 = vadd.f32 %v951, 1e-05
        %v968 = vadd.f32 %v952, 1e-05
        %v969 = vrsqrt.pop %v953
        %v970 = vrsqrt.pop %v954
        %v971 = vrsqrt.pop %v955
        %v972 = vrsqrt.pop %v956
        %v973 = vrsqrt.pop %v957
        %v974 = vrsqrt.pop %v958
        %v975 = vrsqrt.pop %v959
        %v976 = vrsqrt.pop %v960
        %v977 = vrsqrt.pop %v961
        %v978 = vrsqrt.pop %v962
        %v979 = vrsqrt.pop %v963
        %v980 = vrsqrt.pop %v964
        %v981 = vrsqrt.pop %v965
        %v982 = vrsqrt.pop %v966
        %v983 = vrsqrt.pop %v967
        %v984 = vrsqrt.pop %v968
        %v985 = vmul.f32 %v857, %v969
        %v986 = vmul.f32 %v858, %v970
        %v987 = vmul.f32 %v859, %v971
        %v988 = vmul.f32 %v860, %v972
        %v989 = vmul.f32 %v861, %v973
        %v990 = vmul.f32 %v862, %v974
        %v991 = vmul.f32 %v863, %v975
        %v992 = vmul.f32 %v864, %v976
        %v993 = vmul.f32 %v865, %v977
        %v994 = vmul.f32 %v866, %v978
        %v995 = vmul.f32 %v867, %v979
        %v996 = vmul.f32 %v868, %v980
        %v997 = vmul.f32 %v869, %v981
        %v998 = vmul.f32 %v870, %v982
        %v999 = vmul.f32 %v871, %v983
        %v1000 = vmul.f32 %v872, %v984
        %v1001 = vld [vmem:[%s4] sm:$0x1]
        %v1003 = vlaneseq
        %v1004 = vshrl.u32 %v1003, 7
        %v1005 = vsub.s32 0, %v1004
        %v1006 = vrot.slane %v1001, %v1005
        %v1008 = vmul.f32 %v985, %v1006
        %v1009 = vmul.f32 %v986, %v1006
        %v1010 = vmul.f32 %v987, %v1006
        %v1011 = vmul.f32 %v988, %v1006
        %v1012 = vmul.f32 %v989, %v1006
        %v1013 = vmul.f32 %v990, %v1006
        %v1014 = vmul.f32 %v991, %v1006
        %v1015 = vmul.f32 %v992, %v1006
        %v1016 = vmul.f32 %v993, %v1006
        %v1017 = vmul.f32 %v994, %v1006
        %v1018 = vmul.f32 %v995, %v1006
        %v1019 = vmul.f32 %v996, %v1006
        %v1020 = vmul.f32 %v997, %v1006
        %v1021 = vmul.f32 %v998, %v1006
        %v1022 = vmul.f32 %v999, %v1006
        %v1023 = vmul.f32 %v1000, %v1006
        %v1024 = vld [vmem:[%s5] sm:$0x1]
        %v1026 = vlaneseq
        %v1027 = vshrl.u32 %v1026, 7
        %v1028 = vsub.s32 0, %v1027
        %v1029 = vrot.slane %v1024, %v1028
        %v1031 = vadd.f32 %v1008, %v1029
        %v1032 = vadd.f32 %v1009, %v1029
        %v1033 = vadd.f32 %v1010, %v1029
        %v1034 = vadd.f32 %v1011, %v1029
        %v1035 = vadd.f32 %v1012, %v1029
        %v1036 = vadd.f32 %v1013, %v1029
        %v1037 = vadd.f32 %v1014, %v1029
        %v1038 = vadd.f32 %v1015, %v1029
        %v1039 = vadd.f32 %v1016, %v1029
        %v1040 = vadd.f32 %v1017, %v1029
        %v1041 = vadd.f32 %v1018, %v1029
        %v1042 = vadd.f32 %v1019, %v1029
        %v1043 = vadd.f32 %v1020, %v1029
        %v1044 = vadd.f32 %v1021, %v1029
        %v1045 = vadd.f32 %v1022, %v1029
        %v1046 = vadd.f32 %v1023, %v1029
        %1047 = vst.msk [vmem:[%s313] sm:$0xff] %vm524, %v1031
        %1048 = vst.msk [vmem:[%s313 + $0x8] sm:$0xff] %vm524, %v1032
        %1049 = vst.msk [vmem:[%s313 + $0x10] sm:$0xff] %vm524, %v1033
        %1050 = vst.msk [vmem:[%s313 + $0x18] sm:$0xff] %vm524, %v1034
        %1051 = vst.msk [vmem:[%s313 + $0x20] sm:$0xff] %vm524, %v1035
        %1052 = vst.msk [vmem:[%s313 + $0x28] sm:$0xff] %vm524, %v1036
        %1053 = vst.msk [vmem:[%s313 + $0x30] sm:$0xff] %vm524, %v1037
        %1054 = vst.msk [vmem:[%s313 + $0x38] sm:$0xff] %vm524, %v1038
        %1055 = vst.msk [vmem:[%s313 + $0x40] sm:$0xff] %vm524, %v1039
        %1056 = vst.msk [vmem:[%s313 + $0x48] sm:$0xff] %vm524, %v1040
        %1057 = vst.msk [vmem:[%s313 + $0x50] sm:$0xff] %vm524, %v1041
        %1058 = vst.msk [vmem:[%s313 + $0x58] sm:$0xff] %vm524, %v1042
        %1059 = vst.msk [vmem:[%s313 + $0x60] sm:$0xff] %vm524, %v1043
        %1060 = vst.msk [vmem:[%s313 + $0x68] sm:$0xff] %vm524, %v1044
        %1061 = vst.msk [vmem:[%s313 + $0x70] sm:$0xff] %vm524, %v1045
        %1062 = vst.msk [vmem:[%s313 + $0x78] sm:$0xff] %vm524, %v1046
        %s1063 = sand.u32 %s164, 1
        %s1064 = scalar_lea.sflag [#allocation4], %s1063
        %s1065 = sand.u32 %s164, 1
        %s1066 = smul.addr %s1065, 128
        %s1067 = scalar_lea.vmem [#allocation10], %s1066
        // Predicated region
        $region61: #{tpu_custom_call.1} parent=43 // pred_check
          %p1068 = pneg %p174
        $region62: #{tpu_custom_call.1} parent=43 // pred_check_branch
          %1070 = sbr.rel (%p1068) target = $region64
        $region63: #{tpu_custom_call.1} parent=43 // pred_region
          %s1072 = ssub.s32 2048, 2048
          %1073 = vsyncadd %s1064, %s1072
          %s1074 = smul.addr %s25, 16
          %s1075 = smul.addr %s1074, 128
          %s1076 = scalar_lea.hbm %s6, %s1075
          %s1077 = sshll.u32 %s1067, 4
          %s1078 = int_to_ptr.vmem [resolvable:$true] %s1077
          %1083 = dma.vmem_to_hbm [thread:$0]  %s1078, 2048, %s1076, %s1064, 128, 128, 8
        $region64: #{tpu_custom_call.1} parent=43 // pred_fallthru
          _
      $region44: #{tpu_custom_call.1} parent=5 // pred_fallthru
        _
      %p1084 = scmp.le.s32.totalorder 2, %s20
      // Predicated region
      $region65: #{tpu_custom_call.1} parent=5 // pred_check
        %p1085 = pneg %p1084
      $region66: #{tpu_custom_call.1} parent=5 // pred_check_branch
        %1087 = sbr.rel (%p1085) target = $region68
      $region67: #{tpu_custom_call.1} parent=5 // pred_region
        %s1088 = ssub.s32 %s20, 2
        // Predicated region
        $region69: #{tpu_custom_call.1} parent=67 // pred_check
          %p1089 = pneg %p180
        $region70: #{tpu_custom_call.1} parent=67 // pred_check_branch
          %1091 = sbr.rel (%p1089) target = $region72
        $region71: #{tpu_custom_call.1} parent=67 // pred_region
          %s1092 = sand.u32 %s165, 1
          %s1093 = scalar_lea.sflag [#allocation4], %s1092
          %s1094 = sand.u32 %s165, 1
          %s1095 = smul.addr %s1094, 128
          %s1096 = scalar_lea.vmem [#allocation10], %s1095
          %1097 = dma.done %s1093, 2048
        $region72: #{tpu_custom_call.1} parent=67 // pred_fallthru
          _
      $region68: #{tpu_custom_call.1} parent=5 // pred_fallthru
        _
    $region6: #{tpu_custom_call.1} parent=1 // loop_footer
      %s24 = sadd.s32 1, %s20
    $region7: #{tpu_custom_call.1} parent=1 // loop_footer_branch
      %19 = sbr.rel target = $region3
    $region8: #{tpu_custom_call.1} parent=1 // loop_exit
      _
    %1098 = vsyncpa [#allocation3], 1
    %s1099 = scalar_lea.sflag [#allocation3], 1
    %1100 = vsyncpa %s1099, 1
    %1101 = vsyncpa [#allocation6], 1
    %1102 = vsyncpa [#allocation9], 1
    %1103 = vsyncpa [#allocation4], 1
    %s1104 = scalar_lea.sflag [#allocation4], 1
    %1105 = vsyncpa %s1104, 1

</llo_original>
